<compile_context>
chip_gen: v5e
topology: v5e:2x2
jax: 0.10.0
libtpu: 0.0.40
codegen_flags: <defaults>
</compile_context>

<pallas_src>
import functools
import numpy as np
import jax
import jax.numpy as jnp
from jax.experimental import pallas as pl
from jax.experimental.pallas import tpu as pltpu


def _round_up(a: int, m: int) -> int:
    return ((a + m - 1) // m) * m


def _adaptive_avg_pool_matrix(seq_len: int, target_length: int) -> np.ndarray:
    """Pooling matrix P replicating torch AdaptiveAvgPool1d (rows sum to 1)."""
    P = np.zeros((target_length, seq_len), np.float32)
    for i in range(target_length):
        start = (i * seq_len) // target_length
        end = -((-(i + 1) * seq_len) // target_length)  # ceil division
        P[i, start:end] = 1.0 / (end - start)
    return P


def _projector_kernel(x_ref, c_ref, o_ref, *, offs, dims):
    # Per grid step (one batch element):
    #   x: (S, D_in)                 c: constant slab (R, LANE)
    #   o: (T, D_out_pad)
    o_w1, o_rb, o_w2, o_b2, o_p = offs
    S, T, D_in, D_hid_pad, D_out_pad = dims

    w1 = c_ref[pl.ds(o_w1, D_in), pl.ds(0, D_hid_pad)]      # (D_in, D_hid_pad)
    rb = c_ref[pl.ds(o_rb, S), pl.ds(0, D_hid_pad)]          # (S, D_hid_pad)  f32
    w2 = c_ref[pl.ds(o_w2, D_hid_pad), pl.ds(0, D_out_pad)]  # (D_hid_pad, D_out_pad)
    b2 = c_ref[pl.ds(o_b2, 1), pl.ds(0, D_out_pad)]          # (1, D_out_pad)
    P = c_ref[pl.ds(o_p, T), pl.ds(0, S)]                    # (T, S)

    h1 = jnp.dot(x_ref[...], w1, preferred_element_type=jnp.float32)
    h1 = jnp.maximum(h1 + rb, 0.0)        # ReLU(x@W1 + (pos@W1 + b1)); pad cols stay 0
    # Dropout(0.1): identity in inference mode.
    hp = jnp.dot(P, h1, preferred_element_type=jnp.float32)          # pool first (exact)
    o_ref[...] = (jnp.dot(hp, w2, preferred_element_type=jnp.float32)
                  + b2).astype(o_ref.dtype)


def make_audio_modality_projector(pos_encoding, w1, b1, w2, b2,
                                  seq_len, target_length):
    """One-time init: fold / pad / pack all constants, return jitted apply(x)."""
    pos_encoding = np.asarray(pos_encoding, np.float32)
    w1 = np.asarray(w1, np.float32)
    b1 = np.asarray(b1, np.float32)
    w2 = np.asarray(w2, np.float32)
    b2 = np.asarray(b2, np.float32)

    S, T = int(seq_len), int(target_length)
    D_in, D_hid = w1.shape
    D_out = w2.shape[1]
    D_hid_pad = _round_up(max(D_hid, 128), 128)   # lane-dense hidden dim
    D_out_pad = _round_up(max(D_out, 128), 128)   # lane-dense output stores
    LANE = max(D_hid_pad, D_out_pad, _round_up(S, 128))

    # --- fold the position-aware add into a per-row bias for the 1st Linear ---
    L = pos_encoding.shape[1]
    se = min(S, L)
    pos_full = np.zeros((S, D_in), np.float32)
    pos_full[:se] = pos_encoding[0, :se]
    row_bias = pos_full @ w1 + b1                            # (S, D_hid), f32

    # --- adaptive-avg-pool matrix (per batch element) ---
    P = _adaptive_avg_pool_matrix(S, T)                      # (T, S)

    # --- pack every constant into one 128-lane slab (single DMA) ---
    row = 0
    o_w1 = row; row += _round_up(D_in, 8)
    o_rb = row; row += _round_up(S, 8)
    o_w2 = row; row += D_hid_pad
    o_b2 = row; row += 8
    o_p = row;  row += _round_up(T, 8)
    R = _round_up(row, 8)

    slab_np = np.zeros((R, LANE), np.float32)
    slab_np[o_w1:o_w1 + D_in, :D_hid] = w1
    slab_np[o_rb:o_rb + S, :D_hid] = row_bias
    slab_np[o_w2:o_w2 + D_hid, :D_out] = w2
    slab_np[o_b2, :D_out] = b2
    slab_np[o_p:o_p + T, :S] = P
    slab = jnp.asarray(slab_np)                              # pre-materialized on device

    kernel = functools.partial(
        _projector_kernel,
        offs=(o_w1, o_rb, o_w2, o_b2, o_p),
        dims=(S, T, D_in, D_hid_pad, D_out_pad),
    )

    @jax.jit
    def apply(x):
        # x: [B, S, D_in] -> [B, T, D_out]
        B = x.shape[0]
        assert x.shape[1] == S and x.shape[2] == D_in, x.shape
        out = pl.pallas_call(
            kernel,
            out_shape=jax.ShapeDtypeStruct((B, T, D_out_pad), x.dtype),
            grid_spec=pltpu.PrefetchScalarGridSpec(
                num_scalar_prefetch=0,
                grid=(B,),
                in_specs=[
                    # one batch element per grid step (squeezed leading dim)
                    pl.BlockSpec((None, S, D_in), lambda b: (b, 0, 0)),
                    # constant slab: same block every step -> fetched once
                    pl.BlockSpec((R, LANE), lambda b: (0, 0)),
                ],
                out_specs=pl.BlockSpec((None, T, D_out_pad), lambda b: (b, 0, 0)),
            ),
            compiler_params=pltpu.CompilerParams(
                dimension_semantics=("parallel",)),   # shards over v7x's 2 TCs
        )(x, slab)
        return out[:, :, :D_out]

    return apply


def _reference(x, pos_encoding, w1, b1, w2, b2, target_length):
    """Pure-JAX reference mirroring the PyTorch forward (eval mode)."""
    B, S, D_in = x.shape
    seq_len = min(S, pos_encoding.shape[1])
    x = x.at[:, :seq_len, :].add(pos_encoding[:, :seq_len, :])
    h = jnp.maximum(x @ w1 + b1, 0.0)
    h = h @ w2 + b2                                           # (B, S, D_out)
    P = jnp.asarray(_adaptive_avg_pool_matrix(S, target_length))
    return jnp.einsum("ts,bsd->btd", P, h)


if __name__ == "__main__":
    # cfg-like shapes (small): audio_hidden_dim=32, lm_hidden_dim=64,
    # original_length = (audio_max_length//audio_patch_size)
    #                 * (audio_n_mels//audio_freq_patch_size) = 8 * 2 = 16,
    # audio_token_target_length = 8.
    B, S = 2, 16
    D_in, D_out = 32, 64
    D_hid = D_in // 2
    original_length = 16
    target_length = 8

    key = jax.random.PRNGKey(0)
    k_x, k_pos, k_w1, k_b1, k_w2, k_b2 = jax.random.split(key, 6)

    x = jax.random.normal(k_x, (B, S, D_in), jnp.float32)
    pos_encoding = jax.random.normal(k_pos, (1, original_length, D_in), jnp.float32) * 0.02
    w1 = jax.random.uniform(k_w1, (D_in, D_hid), jnp.float32, -1, 1) / np.sqrt(D_in)
    b1 = jax.random.uniform(k_b1, (D_hid,), jnp.float32, -1, 1) / np.sqrt(D_in)
    w2 = jax.random.uniform(k_w2, (D_hid, D_out), jnp.float32, -1, 1) / np.sqrt(D_hid)
    b2 = jax.random.uniform(k_b2, (D_out,), jnp.float32, -1, 1) / np.sqrt(D_hid)

    # One-time init (all weight-derived prep happens here, not per call).
    projector = make_audio_modality_projector(
        pos_encoding, w1, b1, w2, b2, seq_len=S, target_length=target_length)

    out = jax.block_until_ready(projector(x))

    ref = _reference(x, pos_encoding, w1, b1, w2, b2, target_length)
    assert out.shape == (B, target_length, D_out), out.shape
    # Slightly looser rtol: the (exact-in-real-arithmetic) algebraic fusions
    # re-associate float ops (pos-bias fold, pool-before-W2).
    np.testing.assert_allclose(np.asarray(out), np.asarray(ref), rtol=1e-4, atol=1e-5)

    print("KERNEL_OK")
</pallas_src>

<mosaic_0001>
module attributes {stable_mosaic.version = 11 : i64} {
  func.func @_projector_kernel(%arg0: i32, %arg1: memref<1x16x32xf32, #tpu.memory_space<vmem>>, %arg2: memref<192x128xf32, #tpu.memory_space<vmem>>, %arg3: memref<1x8x128xf32, #tpu.memory_space<vmem>>) attributes {dimension_semantics = [#tpu.dimension_semantics<parallel>], iteration_bounds = array<i64: 2>, scalar_prefetch = 0 : i64, scratch_operands = 0 : i64, tpu.core_type = #tpu.core_type<tc>, window_params = [{transform_indices = @transform_0, window_bounds = array<i64: 1, 16, 32>}, {pipeline_mode = #tpu.pipeline_mode<synchronous>, transform_indices = @transform_1, window_bounds = array<i64: 192, 128>}, {transform_indices = @transform_2, window_bounds = array<i64: 1, 8, 128>}]} {
    %c0 = arith.constant 0 : index
    %c0_0 = arith.constant 0 : index
    %0 = vector.load %arg2[%c0, %c0_0] : memref<192x128xf32, #tpu.memory_space<vmem>>, vector<32x128xf32>
    %c32 = arith.constant 32 : index
    %c0_1 = arith.constant 0 : index
    %1 = vector.load %arg2[%c32, %c0_1] : memref<192x128xf32, #tpu.memory_space<vmem>>, vector<16x128xf32>
    %c48 = arith.constant 48 : index
    %c0_2 = arith.constant 0 : index
    %2 = vector.load %arg2[%c48, %c0_2] : memref<192x128xf32, #tpu.memory_space<vmem>>, vector<128x128xf32>
    %c176 = arith.constant 176 : index
    %c0_3 = arith.constant 0 : index
    %3 = vector.load %arg2[%c176, %c0_3] : memref<192x128xf32, #tpu.memory_space<vmem>>, vector<1x128xf32>
    %c184 = arith.constant 184 : index
    %c0_4 = arith.constant 0 : index
    %4 = vector.load %arg2[%c184, %c0_4] : memref<192x128xf32, #tpu.memory_space<vmem>>, vector<8x16xf32>
    %c0_5 = arith.constant 0 : index
    %c0_6 = arith.constant 0 : index
    %c0_7 = arith.constant 0 : index
    %5 = vector.load %arg1[%c0_5, %c0_6, %c0_7] : memref<1x16x32xf32, #tpu.memory_space<vmem>>, vector<1x16x32xf32>
    %6 = vector.shape_cast %5 : vector<1x16x32xf32> to vector<16x32xf32>
    %cst = arith.constant dense<0.000000e+00> : vector<16x128xf32>
    %7 = tpu.matmul %6, %0, %cst {dimension_numbers = #tpu.dot_dimension_numbers<[1], [0], [0], [1], [0, 0, 1, 1], [], []>} : vector<16x32xf32>, vector<32x128xf32>, vector<16x128xf32> -> vector<16x128xf32>
    %8 = arith.addf %7, %1 : vector<16x128xf32>
    %cst_8 = arith.constant 0.000000e+00 : f32
    %9 = vector.broadcast %cst_8 : f32 to vector<16x128xf32>
    %10 = arith.maximumf %8, %9 : vector<16x128xf32>
    %cst_9 = arith.constant dense<0.000000e+00> : vector<8x128xf32>
    %11 = tpu.matmul %4, %10, %cst_9 {dimension_numbers = #tpu.dot_dimension_numbers<[1], [0], [0], [1], [0, 0, 1, 1], [], []>} : vector<8x16xf32>, vector<16x128xf32>, vector<8x128xf32> -> vector<8x128xf32>
    %cst_10 = arith.constant dense<0.000000e+00> : vector<8x128xf32>
    %12 = tpu.matmul %11, %2, %cst_10 {dimension_numbers = #tpu.dot_dimension_numbers<[1], [0], [0], [1], [0, 0, 1, 1], [], []>} : vector<8x128xf32>, vector<128x128xf32>, vector<8x128xf32> -> vector<8x128xf32>
    %13 = vector.broadcast %3 : vector<1x128xf32> to vector<8x128xf32>
    %14 = arith.addf %12, %13 : vector<8x128xf32>
    %c0_11 = arith.constant 0 : index
    %c0_12 = arith.constant 0 : index
    %c0_13 = arith.constant 0 : index
    %15 = vector.load %arg3[%c0_11, %c0_12, %c0_13] : memref<1x8x128xf32, #tpu.memory_space<vmem>>, vector<1x8x128xf32>
    %16 = vector.shape_cast %15 : vector<1x8x128xf32> to vector<8x128xf32>
    %17 = vector.shape_cast %14 : vector<8x128xf32> to vector<1x8x128xf32>
    tpu.vector_store %arg3[%c0_11, %c0_12, %c0_13], %17 {strides = array<i32>} : memref<1x8x128xf32, #tpu.memory_space<vmem>>, vector<1x8x128xf32>,
    return
  }
  func.func @transform_0(%arg0: i32) -> (i32, i32, i32) {
    %c0_i32 = arith.constant 0 : i32
    %c0_i32_0 = arith.constant 0 : i32
    %c0_i32_1 = arith.constant 0 : i32
    return %arg0, %c0_i32, %c0_i32_0 : i32, i32, i32
  }
  func.func @transform_1(%arg0: i32) -> (i32, i32) {
    %c0_i32 = arith.constant 0 : i32
    %c0_i32_0 = arith.constant 0 : i32
    %c0_i32_1 = arith.constant 0 : i32
    return %c0_i32, %c0_i32_0 : i32, i32
  }
  func.func @transform_2(%arg0: i32) -> (i32, i32, i32) {
    %c0_i32 = arith.constant 0 : i32
    %c0_i32_0 = arith.constant 0 : i32
    %c0_i32_1 = arith.constant 0 : i32
    return %arg0, %c0_i32, %c0_i32_0 : i32, i32, i32
  }
}

</mosaic_0001>

<llo_original>
// kernel: apply.1
$region0: #{apply.1}
  #allocation0 [shape = 'u32[]', space=smem, size = 0x4, offset = 0x4, fixed_abs, tag = 'smem constant byte address 0x4 - core index']
  #allocation1 [shape = 'u32[72,128]{1,0:T(1,128)}', space=vmem, size = 0x9000, scoped, tag = 'internal scratch']
  %s0 = inlined_call_operand.hbm [shape: f32[2,16,32], index: 0, kind: input, shape index: {}]
  %s1 = inlined_call_operand.hbm [shape: f32[192,128], index: 1, kind: input, shape index: {}]
  %s2 = inlined_call_operand.hbm [shape: f32[2,8,128], index: 2, kind: output, shape index: {}]
  %s3 = sld [smem:[#allocation0]]
  $region49: #{apply.1} parent=0
    _
  %s5 = ssub.s32 1, %s3
  %s6 = scalar_select 0, %s5, %s3
  $region1: #{apply.1} parent=0
    #allocation2 [shape = 'u8[16384]{0}', space=vmem, size = 0x4000, scoped, tag = 'input window, operand 0']
    #allocation3 [shape = 's32[2]{0}', space=sflag, size = 0x8, scoped, tag = 'scoped memory for apply.1']
    #allocation4 [shape = 's32[2]{0}', space=sflag, size = 0x8, scoped, tag = 'scoped memory for apply.1']
    #allocation5 [shape = 'u8[98304]{0}', space=vmem, size = 0x18000, scoped, tag = 'input window, operand 1, single buffered']
    #allocation6 [shape = 's32[1]{0}', space=sflag, size = 0x4, scoped, tag = 'scoped memory for apply.1']
    #allocation7 [shape = 'u8[8192]{0}', space=vmem, size = 0x2000, scoped, tag = 'output window, operand 0']
    %7 = vsyncpa [#allocation3], 0
    %s8 = scalar_lea.sflag [#allocation3], 1
    %9 = vsyncpa %s8, 0
    %10 = vsyncpa [#allocation6], 0
    %11 = vsyncpa [#allocation4], 0
    %s12 = scalar_lea.sflag [#allocation4], 1
    %13 = vsyncpa %s12, 0
    loop: start=0, step=1, limit=4
    $region2: #{apply.1} parent=1 // loop_pre_header
      _
    $region3: #{apply.1} parent=1 // loop_header
      %s15 = sphi 0, %s19
      %p16 = scmp.ge.s32.totalorder %s15, 4
      %s25 = sphi 0, %s27
      %s28 = sphi 0, %s25
      %s29 = sphi 0, %s28
      %s45 = sphi 0, %s29
      %s49 = sphi 0, %s49
      %s51 = sphi 0, %s49
      %s52 = sphi 0, %s51
      %s66 = sphi 0, %s52
      %s72 = sphi 0, %s74
      %s75 = sphi 0, %s72
      %s76 = sphi 0, %s75
      %s92 = sphi 0, %s76
    $region4: #{apply.1} parent=1 // loop_header_branch
      %18 = sbr.rel (%p16) target = $region8
    $region5: #{apply.1} parent=1 // loop_body
      %s20 = ssub.s32 %s15, 1
      %s21 = ssub.s32 %s15, 2
      %s22 = sadd.s32 %s15, 1
      %s23 = ssub.s32 %s15, %s22
      %p24 = scmp.eq.s32.totalorder %s23, 0
      %s26 = sadd.s32 %s25, 1
      %s27 = scalar_select %p24, %s25, %s26
      %p30 = pneg %p24
      %p31 = scmp.eq.s32.totalorder %s15, 1
      %p32 = por %p30, %p31
      %p33 = scmp.ne.s32.totalorder %s25, %s28
      %p34 = scmp.eq.s32.totalorder %s15, 0
      %p35 = por %p33, %p34
      %p36 = scmp.ne.s32.totalorder %s25, %s28
      %p37 = scmp.eq.s32.totalorder %s20, 1
      %p38 = por %p36, %p37
      %p39 = scmp.ne.s32.totalorder %s28, %s29
      %p40 = scmp.eq.s32.totalorder %s20, 0
      %p41 = por %p39, %p40
      %p42 = scmp.ne.s32.totalorder %s28, %s29
      %p43 = scmp.eq.s32.totalorder %s21, 1
      %p44 = por %p42, %p43
      %p46 = scmp.ne.s32.totalorder %s29, %s45
      %p47 = scmp.eq.s32.totalorder %s21, 0
      %p48 = por %p46, %p47
      %s50 = sadd.s32 %s49, 1
      %p53 = scmp.eq.s32.totalorder %s15, 1
      %p54 = scmp.ne.s32.totalorder %s49, %s51
      %p55 = scmp.eq.s32.totalorder %s15, 0
      %p56 = por %p54, %p55
      %p57 = scmp.ne.s32.totalorder %s49, %s51
      %p58 = scmp.eq.s32.totalorder %s20, 1
      %p59 = por %p57, %p58
      %p60 = scmp.ne.s32.totalorder %s51, %s52
      %p61 = scmp.eq.s32.totalorder %s20, 0
      %p62 = por %p60, %p61
      %p63 = scmp.ne.s32.totalorder %s51, %s52
      %p64 = scmp.eq.s32.totalorder %s21, 1
      %p65 = por %p63, %p64
      %p67 = scmp.ne.s32.totalorder %s52, %s66
      %p68 = scmp.eq.s32.totalorder %s21, 0
      %p69 = por %p67, %p68
      %s70 = ssub.s32 %s15, %s22
      %p71 = scmp.eq.s32.totalorder %s70, 0
      %s73 = sadd.s32 %s72, 1
      %s74 = scalar_select %p71, %s72, %s73
      %p77 = pneg %p71
      %p78 = scmp.eq.s32.totalorder %s15, 1
      %p79 = por %p77, %p78
      %p80 = scmp.ne.s32.totalorder %s72, %s75
      %p81 = scmp.eq.s32.totalorder %s15, 0
      %p82 = por %p80, %p81
      %p83 = scmp.ne.s32.totalorder %s72, %s75
      %p84 = scmp.eq.s32.totalorder %s20, 1
      %p85 = por %p83, %p84
      %p86 = scmp.ne.s32.totalorder %s75, %s76
      %p87 = scmp.eq.s32.totalorder %s20, 0
      %p88 = por %p86, %p87
      %p89 = scmp.ne.s32.totalorder %s75, %s76
      %p90 = scmp.eq.s32.totalorder %s21, 1
      %p91 = por %p89, %p90
      %p93 = scmp.ne.s32.totalorder %s76, %s92
      %p94 = scmp.eq.s32.totalorder %s21, 0
      %p95 = por %p93, %p94
      %p96 = scmp.le.s32.totalorder 1, %s15
      %p97 = scmp.lt.s32.totalorder %s15, 3
      %p98 = pnand %p96, %p97
      %p99 = pneg %p98
      // Predicated region
      $region9: #{apply.1} parent=5 // pred_check
        _
      $region10: #{apply.1} parent=5 // pred_check_branch
        %101 = sbr.rel (%p98) target = $region12
      $region11: #{apply.1} parent=5 // pred_region
        %s102 = ssub.s32 %s15, 1
        // Predicated region
        $region13: #{apply.1} parent=11 // pred_check
          %p103 = pneg %p62
        $region14: #{apply.1} parent=11 // pred_check_branch
          %105 = sbr.rel (%p103) target = $region16
        $region15: #{apply.1} parent=11 // pred_region
          %107 = vsyncadd [#allocation6], 0
          %s108 = sshll.u32 %s1, 4
          %s109 = int_to_ptr.hbm [resolvable:$true] %s108
          %s110 = sshll.u32 [#allocation5], 4
          %s111 = int_to_ptr.vmem [resolvable:$true] %s110
          %116 = dma.hbm_to_vmem [thread:$0]  %s109, 3072, %s111, [#allocation6], 128, 128, 8
        $region16: #{apply.1} parent=11 // pred_fallthru
          _
      $region12: #{apply.1} parent=5 // pred_fallthru
        _
      %p117 = scmp.lt.s32.totalorder %s15, 2
      // Predicated region
      $region17: #{apply.1} parent=5 // pred_check
        %p118 = pneg %p117
      $region18: #{apply.1} parent=5 // pred_check_branch
        %120 = sbr.rel (%p118) target = $region20
      $region19: #{apply.1} parent=5 // pred_region
        // Predicated region
        $region21: #{apply.1} parent=19 // pred_check
          %p121 = pneg %p35
        $region22: #{apply.1} parent=19 // pred_check_branch
          %123 = sbr.rel (%p121) target = $region24
        $region23: #{apply.1} parent=19 // pred_region
          %s124 = sand.u32 %s25, 1
          %s125 = scalar_lea.sflag [#allocation3], %s124
          %s126 = sand.u32 %s25, 1
          %s127 = smul.addr %s126, 16
          %s128 = scalar_lea.vmem [#allocation2], %s127
          %130 = vsyncadd %s125, 0
          %s131 = smul.addr %s15, 2
          %s132 = smul.addr %s131, 8
          %s133 = scalar_lea.hbm %s0, %s132
          %s134 = sshll.u32 %s133, 4
          %s135 = int_to_ptr.hbm [resolvable:$true] %s134
          %s136 = sshll.u32 %s128, 4
          %s137 = int_to_ptr.vmem [resolvable:$true] %s136
          %142 = dma.hbm_to_vmem [thread:$0]  %s135, 256, %s137, %s125, 128, 128, 8
        $region24: #{apply.1} parent=19 // pred_fallthru
          _
      $region20: #{apply.1} parent=5 // pred_fallthru
        _
      %p143 = scmp.le.s32.totalorder 1, %s15
      %p144 = scmp.lt.s32.totalorder %s15, 3
      %p145 = pnand %p143, %p144
      %p146 = pneg %p145
      // Predicated region
      $region25: #{apply.1} parent=5 // pred_check
        _
      $region26: #{apply.1} parent=5 // pred_check_branch
        %148 = sbr.rel (%p145) target = $region28
      $region27: #{apply.1} parent=5 // pred_region
        %s149 = ssub.s32 %s15, 1
        %s150 = sand.u32 %s28, 1
        %s151 = scalar_lea.sflag [#allocation3], %s150
        %s152 = sand.u32 %s28, 1
        %s153 = smul.addr %s152, 16
        %s154 = scalar_lea.vmem [#allocation2], %s153
        // Predicated region
        $region29: #{apply.1} parent=27 // pred_check
          %p155 = pneg %p41
        $region30: #{apply.1} parent=27 // pred_check_branch
          %157 = sbr.rel (%p155) target = $region32
        $region31: #{apply.1} parent=27 // pred_region
          %159 = dma.done %s151, 256
        $region32: #{apply.1} parent=27 // pred_fallthru
          _
        // Predicated region
        $region33: #{apply.1} parent=27 // pred_check
          %p160 = pneg %p62
        $region34: #{apply.1} parent=27 // pred_check_branch
          %162 = sbr.rel (%p160) target = $region36
        $region35: #{apply.1} parent=27 // pred_region
          %164 = dma.done [#allocation6], 3072
        $region36: #{apply.1} parent=27 // pred_fallthru
          _
        %s165 = sand.u32 %s28, 1
        %s166 = scalar_lea.sflag [#allocation3], %s165
        %s167 = sand.u32 %s28, 1
        %s168 = smul.addr %s167, 16
        %s169 = scalar_lea.vmem [#allocation2], %s168
        %p170 = pneg %p41
        %p171 = pneg %p38
        %p172 = pneg %p62
        %p173 = pneg %p59
        %p174 = pneg %p88
        %p175 = pneg %p85
        %s176 = sand.u32 %s75, 1
        %s177 = scalar_lea.sflag [#allocation4], %s176
        %s178 = sand.u32 %s75, 1
        %s179 = smul.addr %s178, 8
        %s180 = scalar_lea.vmem [#allocation7], %s179
        %v181 = vld [vmem:[#allocation5] sm:$0xff]
        %v182 = vld [vmem:[#allocation5 + $0x8] sm:$0xff]
        %v183 = vld [vmem:[#allocation5 + $0x10] sm:$0xff]
        %v184 = vld [vmem:[#allocation5 + $0x18] sm:$0xff]
        %v185 = vld [vmem:[#allocation5 + $0x20] sm:$0xff]
        %v186 = vld [vmem:[#allocation5 + $0x28] sm:$0xff]
        %v187 = vld [vmem:[#allocation5 + $0x30] sm:$0xff]
        %v188 = vld [vmem:[#allocation5 + $0x38] sm:$0xff]
        %v189 = vld [vmem:[#allocation5 + $0x40] sm:$0xff]
        %v190 = vld [vmem:[#allocation5 + $0x48] sm:$0xff]
        %v191 = vld [vmem:[#allocation5 + $0x50] sm:$0xff]
        %v192 = vld [vmem:[#allocation5 + $0x58] sm:$0xff]
        %v193 = vld [vmem:[#allocation5 + $0x60] sm:$0xff]
        %v194 = vld [vmem:[#allocation5 + $0x68] sm:$0xff]
        %v195 = vld [vmem:[#allocation5 + $0x70] sm:$0xff]
        %v196 = vld [vmem:[#allocation5 + $0x78] sm:$0xff]
        %v197 = vld [vmem:[#allocation5 + $0x80] sm:$0xff]
        %v198 = vld [vmem:[#allocation5 + $0x88] sm:$0xff]
        %v199 = vld [vmem:[#allocation5 + $0x90] sm:$0xff]
        %v200 = vld [vmem:[#allocation5 + $0x98] sm:$0xff]
        %v201 = vld [vmem:[#allocation5 + $0xa0] sm:$0xff]
        %v202 = vld [vmem:[#allocation5 + $0xa8] sm:$0xff]
        %v203 = vld [vmem:[#allocation5 + $0xb0] sm:$0x1]
        %v204 = vld [vmem:[#allocation5 + $0xb8] sm:$0xff]
        %v205 = vld [vmem:[%s154] sm:$0xff]
        %v206 = vld [vmem:[%s154 + $0x8] sm:$0xff]
        %vm207 = vcmask 261120
        %v209 = vsel %vm207, %v205, 0
        %v212 = vsel %vm207, %v206, 0
        %214 = vmatpush.msra.mxu0 0.0
        %215 = vmatpush.msra.mxu0 0.0
        %216 = vmatpush.msra.mxu0 0.0
        %217 = vmatpush.msra.mxu0 0.0
        %218 = vmatpush.msra.mxu0 0.0
        %219 = vmatpush.msra.mxu0 0.0
        %220 = vmatpush.msra.mxu0 0.0
        %221 = vmatpush.msra.mxu0 0.0
        %222 = vmatpush.msra.mxu0 0.0
        %223 = vmatpush.msra.mxu0 0.0
        %224 = vmatpush.msra.mxu0 0.0
        %225 = vmatpush.msra.mxu0 0.0
        %226 = vmatpush.msra.mxu0 %v184
        %227 = vmatpush.msra.mxu0 %v183
        %228 = vmatpush.msra.mxu0 %v182
        %229 = vmatpush.msra.mxu0 %v181
        %230 = vmatmul.f32.gmra.mxu0 %v209
        %v231 = vpop.f32.mrf.mxu0
        %v232 = vadd.f32 %v185, %v231
        %233 = vmatmul.f32.gmra.mxu0 %v212
        %v234 = vpop.f32.mrf.mxu0
        %v235 = vadd.f32 %v186, %v234
        %236 = vdwg.mxu0
        %v237 = vmax.f32 %v232, 0.0
        %v238 = vmax.f32 %v235, 0.0
        %vm239 = vcmask 130048
        %v241 = vsel %vm239, %v204, 0
        %243 = vmatpush.msra.mxu0 0.0
        %244 = vmatpush.msra.mxu0 0.0
        %245 = vmatpush.msra.mxu0 0.0
        %246 = vmatpush.msra.mxu0 0.0
        %247 = vmatpush.msra.mxu0 0.0
        %248 = vmatpush.msra.mxu0 0.0
        %249 = vmatpush.msra.mxu0 0.0
        %250 = vmatpush.msra.mxu0 0.0
        %251 = vmatpush.msra.mxu0 0.0
        %252 = vmatpush.msra.mxu0 0.0
        %253 = vmatpush.msra.mxu0 0.0
        %254 = vmatpush.msra.mxu0 0.0
        %255 = vmatpush.msra.mxu0 0.0
        %256 = vmatpush.msra.mxu0 0.0
        %257 = vmatpush.msra.mxu0 %v238
        %258 = vmatpush.msra.mxu0 %v237
        %259 = vmatmul.f32.gmra.mxu0 %v241
        %v260 = vpop.f32.mrf.mxu0
        %v261 = vadd.f32 0.0, %v260
        %262 = vdwg.mxu0
        %v263 = vperm.slane %v203, 0
        %264 = vmatpush.msra.mxu0 %v202
        %265 = vmatpush.msra.mxu0 %v201
        %266 = vmatpush.msra.mxu0 %v200
        %267 = vmatpush.msra.mxu0 %v199
        %268 = vmatpush.msra.mxu0 %v198
        %269 = vmatpush.msra.mxu0 %v197
        %270 = vmatpush.msra.mxu0 %v196
        %271 = vmatpush.msra.mxu0 %v195
        %272 = vmatpush.msra.mxu0 %v194
        %273 = vmatpush.msra.mxu0 %v193
        %274 = vmatpush.msra.mxu0 %v192
        %275 = vmatpush.msra.mxu0 %v191
        %276 = vmatpush.msra.mxu0 %v190
        %277 = vmatpush.msra.mxu0 %v189
        %278 = vmatpush.msra.mxu0 %v188
        %279 = vmatpush.msra.mxu0 %v187
        %280 = vmatmul.f32.gmra.mxu0 %v261
        %v281 = vpop.f32.mrf.mxu0
        %v282 = vadd.f32 %v263, %v281
        %283 = vdwg.mxu0
        %284 = vst [vmem:[%s180] sm:$0xff] %v282
        %s285 = sand.u32 %s75, 1
        %s286 = scalar_lea.sflag [#allocation4], %s285
        %s287 = sand.u32 %s75, 1
        %s288 = smul.addr %s287, 8
        %s289 = scalar_lea.vmem [#allocation7], %s288
        // Predicated region
        $region37: #{apply.1} parent=27 // pred_check
          %p290 = pneg %p85
        $region38: #{apply.1} parent=27 // pred_check_branch
          %292 = sbr.rel (%p290) target = $region40
        $region39: #{apply.1} parent=27 // pred_region
          %294 = vsyncadd %s286, 0
          %s295 = smul.addr %s20, 8
          %s296 = scalar_lea.hbm %s2, %s295
          %s298 = sshll.u32 %s289, 4
          %s299 = int_to_ptr.vmem [resolvable:$true] %s298
          %s300 = sshll.u32 %s296, 4
          %s301 = int_to_ptr.hbm [resolvable:$true] %s300
          %303 = dma.vmem_to_hbm [thread:$0]  %s299, 128, %s301, %s286
        $region40: #{apply.1} parent=27 // pred_fallthru
          _
      $region28: #{apply.1} parent=5 // pred_fallthru
        _
      %p304 = scmp.le.s32.totalorder 2, %s15
      // Predicated region
      $region41: #{apply.1} parent=5 // pred_check
        %p305 = pneg %p304
      $region42: #{apply.1} parent=5 // pred_check_branch
        %307 = sbr.rel (%p305) target = $region44
      $region43: #{apply.1} parent=5 // pred_region
        %s308 = ssub.s32 %s15, 2
        // Predicated region
        $region45: #{apply.1} parent=43 // pred_check
          %p309 = pneg %p91
        $region46: #{apply.1} parent=43 // pred_check_branch
          %311 = sbr.rel (%p309) target = $region48
        $region47: #{apply.1} parent=43 // pred_region
          %s312 = sand.u32 %s76, 1
          %s313 = scalar_lea.sflag [#allocation4], %s312
          %s314 = sand.u32 %s76, 1
          %s315 = smul.addr %s314, 8
          %s316 = scalar_lea.vmem [#allocation7], %s315
          %318 = dma.done %s313, 128
        $region48: #{apply.1} parent=43 // pred_fallthru
          _
      $region44: #{apply.1} parent=5 // pred_fallthru
        _
    $region6: #{apply.1} parent=1 // loop_footer
      %s19 = sadd.s32 1, %s15
    $region7: #{apply.1} parent=1 // loop_footer_branch
      %14 = sbr.rel target = $region3
    $region8: #{apply.1} parent=1 // loop_exit
      _
    %319 = vsyncpa [#allocation3], 1
    %s320 = scalar_lea.sflag [#allocation3], 1
    %321 = vsyncpa %s320, 1
    %322 = vsyncpa [#allocation6], 1
    %323 = vsyncpa [#allocation4], 1
    %s324 = scalar_lea.sflag [#allocation4], 1
    %325 = vsyncpa %s324, 1

</llo_original>
